<compile_context>
chip_gen: v5e
topology: v5e:2x2
jax: 0.10.0
libtpu: 0.0.40
codegen_flags: <defaults>
</compile_context>

<pallas_src>
import functools

import jax
import jax.numpy as jnp
from jax import lax
from jax.experimental import pallas as pl
from jax.experimental.pallas import tpu as pltpu

_IMAGENET_MEAN = (0.485, 0.456, 0.406)
_IMAGENET_STD = (0.229, 0.224, 0.225)
_OFFSETS = tuple((dy, dx) for dy in (-1, 0, 1) for dx in (-1, 0, 1))
_N_OUT = 64  # VGG16 conv1_1 output channels


def _perceptual_kernel(x_ref, y_ref, w_ref, m_ref, out_ref, *, H, W):
    """One batch image per grid step.

    x_ref, y_ref: (1, C_in, H*W) raw inputs (C_in in {1, 3}), native dtype.
    w_ref:        (64, 28) im2col weight matrix (27 taps + bias column), f32.
    m_ref:        (9, H*W) f32 zero-padding halo masks, one row per (dy, dx).
    out_ref:      (1, 2, H*W) lane-partial sums of the conv-feature / ReLU-feature
                  absolute differences, reduced over the 64 output channels.
    """
    HW = H * W
    c_in = x_ref.shape[1]
    ones_row = jnp.ones((1, HW), jnp.float32)

    def normalize(ref):
        t = ref[0].astype(jnp.float32)                        # (c_in, HW)
        rows = []
        for c in range(3):                                    # repeat when c_in == 1
            src = t[c:c + 1, :] if c_in == 3 else t[0:1, :]
            rows.append((src - _IMAGENET_MEAN[c]) * (1.0 / _IMAGENET_STD[c]))
        return jnp.concatenate(rows, axis=0)                  # (3, HW)

    def conv1_1(ref):
        tn = normalize(ref)
        parts = []
        for s, (dy, dx) in enumerate(_OFFSETS):
            off = dy * W + dx                                 # flattened tap offset
            shifted = tn if off == 0 else pltpu.roll(tn, (-off) % HW, axis=1)
            if dy == 0 and dx == 0:
                parts.append(shifted)                         # center tap: no halo
            else:
                parts.append(shifted * m_ref[s:s + 1, :])     # zero the padded taps
        parts.append(ones_row)                                # bias column input
        patches = jnp.concatenate(parts, axis=0)              # (28, HW)
        return jnp.dot(w_ref[...], patches,
                       preferred_element_type=jnp.float32)    # (64, HW) on the MXU

    cx = conv1_1(x_ref)
    cy = conv1_1(y_ref)
    d0 = jnp.abs(cx - cy)                                      # feature '0' (conv)
    d1 = jnp.abs(jnp.maximum(cx, 0.0) - jnp.maximum(cy, 0.0))  # ReLU features
    out_ref[...] = jnp.concatenate(
        [jnp.sum(d0, axis=0, keepdims=True),
         jnp.sum(d1, axis=0, keepdims=True)], axis=0)[None]


def _vmem_limit_bytes(per_step_bytes):
    try:
        cap = int(pltpu.get_tpu_info().vmem_capacity_bytes)
    except Exception:
        cap = 64 * 1024 * 1024  # conservative fallback (v7x per-TensorCore VMEM)
    want = max(32 * 1024 * 1024, 2 * per_step_bytes)
    return int(min(want, (cap * 3) // 4))


@jax.jit
def perceptual_loss(x, y, conv_w, conv_b):
    """Pallas implementation of PerceptualLoss.forward (inputs NCHW, C in {1, 3})."""
    N, C, H, W = x.shape
    assert C in (1, 3), "VGG front-end expects 1 (repeated to 3) or 3 channels"
    assert y.shape == x.shape
    HW = H * W

    # im2col weight matrix: column order is shift-major ((dy, dx), dy-major),
    # channel-minor, with the conv bias as a final all-ones column.
    w = conv_w.astype(jnp.float32)                              # (64, 3, 3, 3)
    b = conv_b.astype(jnp.float32)                              # (64,)
    wcols = jnp.transpose(w, (0, 2, 3, 1)).reshape(_N_OUT, 27)  # [o, (ky,kx,c)]
    wmat = jnp.concatenate([wcols, b[:, None]], axis=1)         # (64, 28)
    K = wmat.shape[1]

    # Per-shift validity masks for the padding=1 halo (1 row per (dy, dx)).
    lane = jnp.arange(HW, dtype=jnp.int32)
    row_id, col_id = lane // W, lane % W
    mask_rows = []
    for dy, dx in _OFFSETS:
        valid = jnp.ones((HW,), jnp.bool_)
        if dy == -1:
            valid = valid & (row_id >= 1)
        if dy == 1:
            valid = valid & (row_id <= H - 2)
        if dx == -1:
            valid = valid & (col_id >= 1)
        if dx == 1:
            valid = valid & (col_id <= W - 2)
        mask_rows.append(valid)
    masks = jnp.stack(mask_rows, axis=0).astype(jnp.float32)    # (9, HW)

    # Flatten spatial dims onto the lane axis (free metadata reshape); stream the
    # native input dtype — the kernel upcasts after the load.
    xr = x.reshape(N, C, HW)
    yr = y.reshape(N, C, HW)

    # Explicit per-step VMEM accounting -> Mosaic VMEM limit.
    in_bytes = x.dtype.itemsize
    per_step = (2 * 2 * C * HW * in_bytes            # x, y blocks, double-buffered
                + (K + 9 + 3) * HW * 4               # patches + masks + normalized
                + 6 * _N_OUT * HW * 4                # cx, cy, relus, diffs
                + _N_OUT * K * 4 + 2 * 2 * HW * 4)   # weights + partial outputs

    kernel = functools.partial(_perceptual_kernel, H=H, W=W)
    partials = pl.pallas_call(
        kernel,
        out_shape=jax.ShapeDtypeStruct((N, 2, HW), jnp.float32),
        grid=(N,),
        in_specs=[
            pl.BlockSpec((1, C, HW), lambda n: (n, 0, 0)),
            pl.BlockSpec((1, C, HW), lambda n: (n, 0, 0)),
            pl.BlockSpec((_N_OUT, K), lambda n: (0, 0)),   # resident weights
            pl.BlockSpec((9, HW), lambda n: (0, 0)),       # resident halo masks
        ],
        out_specs=pl.BlockSpec((1, 2, HW), lambda n: (n, 0, 0)),
        compiler_params=pltpu.CompilerParams(
            dimension_semantics=("parallel",),
            vmem_limit_bytes=_vmem_limit_bytes(per_step)),
    )(xr, yr, wmat, masks)

    # Five collected features: [conv, relu, relu, relu, relu]; each term is a
    # mean(|xf - yf|) over N * 64 * H * W elements.
    sums = jnp.sum(partials, axis=(0, 2))                  # (2,)
    denom = float(N * _N_OUT * H * W)
    return (sums[0] + 4.0 * sums[1]) / denom


def _perceptual_loss_ref(x, y, conv_w, conv_b):
    """Pure-JAX reference (normalize -> conv1_1 -> ReLU feature stack -> L1 means)."""
    mean = jnp.array(_IMAGENET_MEAN, jnp.float32).reshape(1, 3, 1, 1)
    std = jnp.array(_IMAGENET_STD, jnp.float32).reshape(1, 3, 1, 1)
    if x.shape[1] == 1:
        x = jnp.tile(x, (1, 3, 1, 1))
        y = jnp.tile(y, (1, 3, 1, 1))
    xn = (x.astype(jnp.float32) - mean) / std
    yn = (y.astype(jnp.float32) - mean) / std
    dn = lax.conv_dimension_numbers(xn.shape, conv_w.shape, ('NCHW', 'OIHW', 'NCHW'))

    def conv(a):
        out = lax.conv_general_dilated(
            a, conv_w.astype(jnp.float32), (1, 1), 'SAME',
            dimension_numbers=dn, precision=lax.Precision.HIGHEST)
        return out + conv_b.astype(jnp.float32).reshape(1, -1, 1, 1)

    cx, cy = conv(xn), conv(yn)
    rx, ry = jax.nn.relu(cx), jax.nn.relu(cy)
    return jnp.mean(jnp.abs(cx - cy)) + 4.0 * jnp.mean(jnp.abs(rx - ry))


if __name__ == "__main__":
    key = jax.random.PRNGKey(0)
    kx, ky, kw, kb, k1, k2 = jax.random.split(key, 6)

    # TODO(synk): stand-in for pretrained VGG16 conv1_1 weights (external data).
    conv_w = jax.random.normal(kw, (_N_OUT, 3, 3, 3), jnp.float32) * 0.1
    conv_b = jax.random.normal(kb, (_N_OUT,), jnp.float32) * 0.1

    # Test 1: RGB inputs, batch=2, 16x16.
    x = jax.random.uniform(kx, (2, 3, 16, 16), jnp.float32)
    y = jax.random.uniform(ky, (2, 3, 16, 16), jnp.float32)
    out = jax.block_until_ready(perceptual_loss(x, y, conv_w, conv_b))
    ref = jax.block_until_ready(_perceptual_loss_ref(x, y, conv_w, conv_b))
    assert jnp.allclose(out, ref, rtol=5e-3, atol=5e-3), (out, ref)

    # Test 2: grayscale inputs (C == 1 -> repeat-to-3-channels path), H != W.
    x2 = jax.random.uniform(k1, (2, 1, 16, 24), jnp.float32)
    y2 = jax.random.uniform(k2, (2, 1, 16, 24), jnp.float32)
    out2 = jax.block_until_ready(perceptual_loss(x2, y2, conv_w, conv_b))
    ref2 = jax.block_until_ready(_perceptual_loss_ref(x2, y2, conv_w, conv_b))
    assert jnp.allclose(out2, ref2, rtol=5e-3, atol=5e-3), (out2, ref2)

    print("KERNEL_OK")
</pallas_src>

<mosaic_0001>
module attributes {stable_mosaic.version = 11 : i64} {
  func.func @_perceptual_kernel(%arg0: i32, %arg1: memref<1x3x256xf32, #tpu.memory_space<vmem>>, %arg2: memref<1x3x256xf32, #tpu.memory_space<vmem>>, %arg3: memref<64x28xf32, #tpu.memory_space<vmem>>, %arg4: memref<9x256xf32, #tpu.memory_space<vmem>>, %arg5: memref<1x2x256xf32, #tpu.memory_space<vmem>>) attributes {dimension_semantics = [#tpu.dimension_semantics<parallel>], iteration_bounds = array<i64: 2>, scalar_prefetch = 0 : i64, scratch_operands = 0 : i64, tpu.core_type = #tpu.core_type<tc>, window_params = [{transform_indices = @transform_0, window_bounds = array<i64: 1, 3, 256>}, {transform_indices = @transform_1, window_bounds = array<i64: 1, 3, 256>}, {pipeline_mode = #tpu.pipeline_mode<synchronous>, transform_indices = @transform_2, window_bounds = array<i64: 64, 28>}, {pipeline_mode = #tpu.pipeline_mode<synchronous>, transform_indices = @transform_3, window_bounds = array<i64: 9, 256>}, {transform_indices = @transform_4, window_bounds = array<i64: 1, 2, 256>}]} {
    %cst = arith.constant 1.000000e+00 : f32
    %0 = vector.broadcast %cst : f32 to vector<1x256xf32>
    %c0 = arith.constant 0 : index
    %c0_0 = arith.constant 0 : index
    %c0_1 = arith.constant 0 : index
    %1 = vector.load %arg1[%c0, %c0_0, %c0_1] : memref<1x3x256xf32, #tpu.memory_space<vmem>>, vector<1x3x256xf32>
    %2 = vector.shape_cast %1 : vector<1x3x256xf32> to vector<3x256xf32>
    %3 = vector.extract_strided_slice %2 {offsets = [0, 0], sizes = [1, 256], strides = [1, 1]} : vector<3x256xf32> to vector<1x256xf32>
    %cst_2 = arith.constant 4.850000e-01 : f32
    %4 = vector.broadcast %cst_2 : f32 to vector<1x256xf32>
    %5 = arith.subf %3, %4 : vector<1x256xf32>
    %cst_3 = arith.constant 4.36681223 : f32
    %6 = vector.broadcast %cst_3 : f32 to vector<1x256xf32>
    %7 = arith.mulf %5, %6 : vector<1x256xf32>
    %8 = vector.extract_strided_slice %2 {offsets = [1, 0], sizes = [1, 256], strides = [1, 1]} : vector<3x256xf32> to vector<1x256xf32>
    %cst_4 = arith.constant 4.560000e-01 : f32
    %9 = vector.broadcast %cst_4 : f32 to vector<1x256xf32>
    %10 = arith.subf %8, %9 : vector<1x256xf32>
    %cst_5 = arith.constant 4.46428585 : f32
    %11 = vector.broadcast %cst_5 : f32 to vector<1x256xf32>
    %12 = arith.mulf %10, %11 : vector<1x256xf32>
    %13 = vector.extract_strided_slice %2 {offsets = [2, 0], sizes = [1, 256], strides = [1, 1]} : vector<3x256xf32> to vector<1x256xf32>
    %cst_6 = arith.constant 4.060000e-01 : f32
    %14 = vector.broadcast %cst_6 : f32 to vector<1x256xf32>
    %15 = arith.subf %13, %14 : vector<1x256xf32>
    %cst_7 = arith.constant 4.44444466 : f32
    %16 = vector.broadcast %cst_7 : f32 to vector<1x256xf32>
    %17 = arith.mulf %15, %16 : vector<1x256xf32>
    %18 = tpu.concatenate %7, %12, %17 in 0 : vector<1x256xf32>, vector<1x256xf32>, vector<1x256xf32> -> vector<3x256xf32>
    %c17_i32 = arith.constant 17 : i32
    %19 = tpu.dynamic_rotate %18 by %c17_i32 dim 1 : vector<3x256xf32>, i32 -> vector<3x256xf32>
    %c0_8 = arith.constant 0 : index
    %c0_9 = arith.constant 0 : index
    %20 = vector.load %arg4[%c0_8, %c0_9] : memref<9x256xf32, #tpu.memory_space<vmem>>, vector<1x256xf32>
    %21 = vector.broadcast %20 : vector<1x256xf32> to vector<3x256xf32>
    %22 = arith.mulf %19, %21 : vector<3x256xf32>
    %c16_i32 = arith.constant 16 : i32
    %23 = tpu.dynamic_rotate %18 by %c16_i32 dim 1 : vector<3x256xf32>, i32 -> vector<3x256xf32>
    %c1 = arith.constant 1 : index
    %c0_10 = arith.constant 0 : index
    %24 = vector.load %arg4[%c1, %c0_10] : memref<9x256xf32, #tpu.memory_space<vmem>>, vector<1x256xf32>
    %25 = vector.broadcast %24 : vector<1x256xf32> to vector<3x256xf32>
    %26 = arith.mulf %23, %25 : vector<3x256xf32>
    %c15_i32 = arith.constant 15 : i32
    %27 = tpu.dynamic_rotate %18 by %c15_i32 dim 1 : vector<3x256xf32>, i32 -> vector<3x256xf32>
    %c2 = arith.constant 2 : index
    %c0_11 = arith.constant 0 : index
    %28 = vector.load %arg4[%c2, %c0_11] : memref<9x256xf32, #tpu.memory_space<vmem>>, vector<1x256xf32>
    %29 = vector.broadcast %28 : vector<1x256xf32> to vector<3x256xf32>
    %30 = arith.mulf %27, %29 : vector<3x256xf32>
    %c1_i32 = arith.constant 1 : i32
    %31 = tpu.dynamic_rotate %18 by %c1_i32 dim 1 : vector<3x256xf32>, i32 -> vector<3x256xf32>
    %c3 = arith.constant 3 : index
    %c0_12 = arith.constant 0 : index
    %32 = vector.load %arg4[%c3, %c0_12] : memref<9x256xf32, #tpu.memory_space<vmem>>, vector<1x256xf32>
    %33 = vector.broadcast %32 : vector<1x256xf32> to vector<3x256xf32>
    %34 = arith.mulf %31, %33 : vector<3x256xf32>
    %c255_i32 = arith.constant 255 : i32
    %35 = tpu.dynamic_rotate %18 by %c255_i32 dim 1 : vector<3x256xf32>, i32 -> vector<3x256xf32>
    %c5 = arith.constant 5 : index
    %c0_13 = arith.constant 0 : index
    %36 = vector.load %arg4[%c5, %c0_13] : memref<9x256xf32, #tpu.memory_space<vmem>>, vector<1x256xf32>
    %37 = vector.broadcast %36 : vector<1x256xf32> to vector<3x256xf32>
    %38 = arith.mulf %35, %37 : vector<3x256xf32>
    %c241_i32 = arith.constant 241 : i32
    %39 = tpu.dynamic_rotate %18 by %c241_i32 dim 1 : vector<3x256xf32>, i32 -> vector<3x256xf32>
    %c6 = arith.constant 6 : index
    %c0_14 = arith.constant 0 : index
    %40 = vector.load %arg4[%c6, %c0_14] : memref<9x256xf32, #tpu.memory_space<vmem>>, vector<1x256xf32>
    %41 = vector.broadcast %40 : vector<1x256xf32> to vector<3x256xf32>
    %42 = arith.mulf %39, %41 : vector<3x256xf32>
    %c240_i32 = arith.constant 240 : i32
    %43 = tpu.dynamic_rotate %18 by %c240_i32 dim 1 : vector<3x256xf32>, i32 -> vector<3x256xf32>
    %c7 = arith.constant 7 : index
    %c0_15 = arith.constant 0 : index
    %44 = vector.load %arg4[%c7, %c0_15] : memref<9x256xf32, #tpu.memory_space<vmem>>, vector<1x256xf32>
    %45 = vector.broadcast %44 : vector<1x256xf32> to vector<3x256xf32>
    %46 = arith.mulf %43, %45 : vector<3x256xf32>
    %c239_i32 = arith.constant 239 : i32
    %47 = tpu.dynamic_rotate %18 by %c239_i32 dim 1 : vector<3x256xf32>, i32 -> vector<3x256xf32>
    %c8 = arith.constant 8 : index
    %c0_16 = arith.constant 0 : index
    %48 = vector.load %arg4[%c8, %c0_16] : memref<9x256xf32, #tpu.memory_space<vmem>>, vector<1x256xf32>
    %49 = vector.broadcast %48 : vector<1x256xf32> to vector<3x256xf32>
    %50 = arith.mulf %47, %49 : vector<3x256xf32>
    %51 = tpu.concatenate %22, %26, %30, %34, %18, %38, %42, %46, %50, %0 in 0 : vector<3x256xf32>, vector<3x256xf32>, vector<3x256xf32>, vector<3x256xf32>, vector<3x256xf32>, vector<3x256xf32>, vector<3x256xf32>, vector<3x256xf32>, vector<3x256xf32>, vector<1x256xf32> -> vector<28x256xf32>
    %c0_17 = arith.constant 0 : index
    %c0_18 = arith.constant 0 : index
    %52 = vector.load %arg3[%c0_17, %c0_18] : memref<64x28xf32, #tpu.memory_space<vmem>>, vector<64x28xf32>
    %cst_19 = arith.constant dense<0.000000e+00> : vector<64x256xf32>
    %53 = tpu.matmul %52, %51, %cst_19 {dimension_numbers = #tpu.dot_dimension_numbers<[1], [0], [0], [1], [0, 0, 1, 1], [], []>} : vector<64x28xf32>, vector<28x256xf32>, vector<64x256xf32> -> vector<64x256xf32>
    %c0_20 = arith.constant 0 : index
    %c0_21 = arith.constant 0 : index
    %c0_22 = arith.constant 0 : index
    %54 = vector.load %arg2[%c0_20, %c0_21, %c0_22] : memref<1x3x256xf32, #tpu.memory_space<vmem>>, vector<1x3x256xf32>
    %55 = vector.shape_cast %54 : vector<1x3x256xf32> to vector<3x256xf32>
    %56 = vector.extract_strided_slice %55 {offsets = [0, 0], sizes = [1, 256], strides = [1, 1]} : vector<3x256xf32> to vector<1x256xf32>
    %cst_23 = arith.constant 4.850000e-01 : f32
    %57 = vector.broadcast %cst_23 : f32 to vector<1x256xf32>
    %58 = arith.subf %56, %57 : vector<1x256xf32>
    %cst_24 = arith.constant 4.36681223 : f32
    %59 = vector.broadcast %cst_24 : f32 to vector<1x256xf32>
    %60 = arith.mulf %58, %59 : vector<1x256xf32>
    %61 = vector.extract_strided_slice %55 {offsets = [1, 0], sizes = [1, 256], strides = [1, 1]} : vector<3x256xf32> to vector<1x256xf32>
    %cst_25 = arith.constant 4.560000e-01 : f32
    %62 = vector.broadcast %cst_25 : f32 to vector<1x256xf32>
    %63 = arith.subf %61, %62 : vector<1x256xf32>
    %cst_26 = arith.constant 4.46428585 : f32
    %64 = vector.broadcast %cst_26 : f32 to vector<1x256xf32>
    %65 = arith.mulf %63, %64 : vector<1x256xf32>
    %66 = vector.extract_strided_slice %55 {offsets = [2, 0], sizes = [1, 256], strides = [1, 1]} : vector<3x256xf32> to vector<1x256xf32>
    %cst_27 = arith.constant 4.060000e-01 : f32
    %67 = vector.broadcast %cst_27 : f32 to vector<1x256xf32>
    %68 = arith.subf %66, %67 : vector<1x256xf32>
    %cst_28 = arith.constant 4.44444466 : f32
    %69 = vector.broadcast %cst_28 : f32 to vector<1x256xf32>
    %70 = arith.mulf %68, %69 : vector<1x256xf32>
    %71 = tpu.concatenate %60, %65, %70 in 0 : vector<1x256xf32>, vector<1x256xf32>, vector<1x256xf32> -> vector<3x256xf32>
    %c17_i32_29 = arith.constant 17 : i32
    %72 = tpu.dynamic_rotate %71 by %c17_i32_29 dim 1 : vector<3x256xf32>, i32 -> vector<3x256xf32>
    %c0_30 = arith.constant 0 : index
    %c0_31 = arith.constant 0 : index
    %73 = vector.load %arg4[%c0_30, %c0_31] : memref<9x256xf32, #tpu.memory_space<vmem>>, vector<1x256xf32>
    %74 = vector.broadcast %73 : vector<1x256xf32> to vector<3x256xf32>
    %75 = arith.mulf %72, %74 : vector<3x256xf32>
    %c16_i32_32 = arith.constant 16 : i32
    %76 = tpu.dynamic_rotate %71 by %c16_i32_32 dim 1 : vector<3x256xf32>, i32 -> vector<3x256xf32>
    %c1_33 = arith.constant 1 : index
    %c0_34 = arith.constant 0 : index
    %77 = vector.load %arg4[%c1_33, %c0_34] : memref<9x256xf32, #tpu.memory_space<vmem>>, vector<1x256xf32>
    %78 = vector.broadcast %77 : vector<1x256xf32> to vector<3x256xf32>
    %79 = arith.mulf %76, %78 : vector<3x256xf32>
    %c15_i32_35 = arith.constant 15 : i32
    %80 = tpu.dynamic_rotate %71 by %c15_i32_35 dim 1 : vector<3x256xf32>, i32 -> vector<3x256xf32>
    %c2_36 = arith.constant 2 : index
    %c0_37 = arith.constant 0 : index
    %81 = vector.load %arg4[%c2_36, %c0_37] : memref<9x256xf32, #tpu.memory_space<vmem>>, vector<1x256xf32>
    %82 = vector.broadcast %81 : vector<1x256xf32> to vector<3x256xf32>
    %83 = arith.mulf %80, %82 : vector<3x256xf32>
    %c1_i32_38 = arith.constant 1 : i32
    %84 = tpu.dynamic_rotate %71 by %c1_i32_38 dim 1 : vector<3x256xf32>, i32 -> vector<3x256xf32>
    %c3_39 = arith.constant 3 : index
    %c0_40 = arith.constant 0 : index
    %85 = vector.load %arg4[%c3_39, %c0_40] : memref<9x256xf32, #tpu.memory_space<vmem>>, vector<1x256xf32>
    %86 = vector.broadcast %85 : vector<1x256xf32> to vector<3x256xf32>
    %87 = arith.mulf %84, %86 : vector<3x256xf32>
    %c255_i32_41 = arith.constant 255 : i32
    %88 = tpu.dynamic_rotate %71 by %c255_i32_41 dim 1 : vector<3x256xf32>, i32 -> vector<3x256xf32>
    %c5_42 = arith.constant 5 : index
    %c0_43 = arith.constant 0 : index
    %89 = vector.load %arg4[%c5_42, %c0_43] : memref<9x256xf32, #tpu.memory_space<vmem>>, vector<1x256xf32>
    %90 = vector.broadcast %89 : vector<1x256xf32> to vector<3x256xf32>
    %91 = arith.mulf %88, %90 : vector<3x256xf32>
    %c241_i32_44 = arith.constant 241 : i32
    %92 = tpu.dynamic_rotate %71 by %c241_i32_44 dim 1 : vector<3x256xf32>, i32 -> vector<3x256xf32>
    %c6_45 = arith.constant 6 : index
    %c0_46 = arith.constant 0 : index
    %93 = vector.load %arg4[%c6_45, %c0_46] : memref<9x256xf32, #tpu.memory_space<vmem>>, vector<1x256xf32>
    %94 = vector.broadcast %93 : vector<1x256xf32> to vector<3x256xf32>
    %95 = arith.mulf %92, %94 : vector<3x256xf32>
    %c240_i32_47 = arith.constant 240 : i32
    %96 = tpu.dynamic_rotate %71 by %c240_i32_47 dim 1 : vector<3x256xf32>, i32 -> vector<3x256xf32>
    %c7_48 = arith.constant 7 : index
    %c0_49 = arith.constant 0 : index
    %97 = vector.load %arg4[%c7_48, %c0_49] : memref<9x256xf32, #tpu.memory_space<vmem>>, vector<1x256xf32>
    %98 = vector.broadcast %97 : vector<1x256xf32> to vector<3x256xf32>
    %99 = arith.mulf %96, %98 : vector<3x256xf32>
    %c239_i32_50 = arith.constant 239 : i32
    %100 = tpu.dynamic_rotate %71 by %c239_i32_50 dim 1 : vector<3x256xf32>, i32 -> vector<3x256xf32>
    %c8_51 = arith.constant 8 : index
    %c0_52 = arith.constant 0 : index
    %101 = vector.load %arg4[%c8_51, %c0_52] : memref<9x256xf32, #tpu.memory_space<vmem>>, vector<1x256xf32>
    %102 = vector.broadcast %101 : vector<1x256xf32> to vector<3x256xf32>
    %103 = arith.mulf %100, %102 : vector<3x256xf32>
    %104 = tpu.concatenate %75, %79, %83, %87, %71, %91, %95, %99, %103, %0 in 0 : vector<3x256xf32>, vector<3x256xf32>, vector<3x256xf32>, vector<3x256xf32>, vector<3x256xf32>, vector<3x256xf32>, vector<3x256xf32>, vector<3x256xf32>, vector<3x256xf32>, vector<1x256xf32> -> vector<28x256xf32>
    %c0_53 = arith.constant 0 : index
    %c0_54 = arith.constant 0 : index
    %105 = vector.load %arg3[%c0_53, %c0_54] : memref<64x28xf32, #tpu.memory_space<vmem>>, vector<64x28xf32>
    %cst_55 = arith.constant dense<0.000000e+00> : vector<64x256xf32>
    %106 = tpu.matmul %105, %104, %cst_55 {dimension_numbers = #tpu.dot_dimension_numbers<[1], [0], [0], [1], [0, 0, 1, 1], [], []>} : vector<64x28xf32>, vector<28x256xf32>, vector<64x256xf32> -> vector<64x256xf32>
    %107 = arith.subf %53, %106 : vector<64x256xf32>
    %108 = math.absf %107 : vector<64x256xf32>
    %cst_56 = arith.constant 0.000000e+00 : f32
    %109 = vector.broadcast %cst_56 : f32 to vector<64x256xf32>
    %110 = arith.maximumf %53, %109 : vector<64x256xf32>
    %cst_57 = arith.constant 0.000000e+00 : f32
    %111 = vector.broadcast %cst_57 : f32 to vector<64x256xf32>
    %112 = arith.maximumf %106, %111 : vector<64x256xf32>
    %113 = arith.subf %110, %112 : vector<64x256xf32>
    %114 = math.absf %113 : vector<64x256xf32>
    %cst_58 = arith.constant dense<0.000000e+00> : vector<256xf32>
    %115 = vector.multi_reduction <add>, %108, %cst_58 [0] : vector<64x256xf32> to vector<256xf32>
    %116 = vector.shape_cast %115 : vector<256xf32> to vector<1x256xf32>
    %cst_59 = arith.constant dense<0.000000e+00> : vector<256xf32>
    %117 = vector.multi_reduction <add>, %114, %cst_59 [0] : vector<64x256xf32> to vector<256xf32>
    %118 = vector.shape_cast %117 : vector<256xf32> to vector<1x256xf32>
    %119 = tpu.concatenate %116, %118 in 0 : vector<1x256xf32>, vector<1x256xf32> -> vector<2x256xf32>
    %120 = vector.shape_cast %119 : vector<2x256xf32> to vector<1x2x256xf32>
    %c0_60 = arith.constant 0 : index
    %c0_61 = arith.constant 0 : index
    %c0_62 = arith.constant 0 : index
    %121 = vector.load %arg5[%c0_60, %c0_61, %c0_62] : memref<1x2x256xf32, #tpu.memory_space<vmem>>, vector<1x2x256xf32>
    tpu.vector_store %arg5[%c0_60, %c0_61, %c0_62], %120 {strides = array<i32>} : memref<1x2x256xf32, #tpu.memory_space<vmem>>, vector<1x2x256xf32>,
    return
  }
  func.func @transform_0(%arg0: i32) -> (i32, i32, i32) {
    %c0_i32 = arith.constant 0 : i32
    %c0_i32_0 = arith.constant 0 : i32
    %c0_i32_1 = arith.constant 0 : i32
    return %arg0, %c0_i32, %c0_i32_0 : i32, i32, i32
  }
  func.func @transform_1(%arg0: i32) -> (i32, i32, i32) {
    %c0_i32 = arith.constant 0 : i32
    %c0_i32_0 = arith.constant 0 : i32
    %c0_i32_1 = arith.constant 0 : i32
    return %arg0, %c0_i32, %c0_i32_0 : i32, i32, i32
  }
  func.func @transform_2(%arg0: i32) -> (i32, i32) {
    %c0_i32 = arith.constant 0 : i32
    %c0_i32_0 = arith.constant 0 : i32
    %c0_i32_1 = arith.constant 0 : i32
    return %c0_i32, %c0_i32_0 : i32, i32
  }
  func.func @transform_3(%arg0: i32) -> (i32, i32) {
    %c0_i32 = arith.constant 0 : i32
    %c0_i32_0 = arith.constant 0 : i32
    %c0_i32_1 = arith.constant 0 : i32
    return %c0_i32, %c0_i32_0 : i32, i32
  }
  func.func @transform_4(%arg0: i32) -> (i32, i32, i32) {
    %c0_i32 = arith.constant 0 : i32
    %c0_i32_0 = arith.constant 0 : i32
    %c0_i32_1 = arith.constant 0 : i32
    return %arg0, %c0_i32, %c0_i32_0 : i32, i32, i32
  }
}

</mosaic_0001>

<llo_original>
// kernel: perceptual_loss.1
$region0: #{perceptual_loss.1}
  #allocation0 [shape = 'u32[]', space=smem, size = 0x4, offset = 0x4, fixed_abs, tag = 'smem constant byte address 0x4 - core index']
  #allocation1 [shape = 'u32[72,128]{1,0:T(1,128)}', space=vmem, size = 0x9000, scoped, tag = 'internal scratch']
  %s0 = inlined_call_operand.vmem [shape: f32[2,3,256], index: 0, kind: input, shape index: {}]
  %s1 = inlined_call_operand.vmem [shape: f32[2,3,256], index: 1, kind: input, shape index: {}]
  %s2 = inlined_call_operand.vmem [shape: f32[64,28], index: 2, kind: input, shape index: {}]
  %s3 = inlined_call_operand.vmem [shape: f32[9,256], index: 3, kind: input, shape index: {}]
  %s4 = inlined_call_operand.vmem [shape: f32[2,2,256], index: 4, kind: output, shape index: {}]
  %s5 = sld [smem:[#allocation0]]
  $region49: #{perceptual_loss.1} parent=0
    _
  %s7 = ssub.s32 1, %s5
  %s8 = scalar_select 0, %s7, %s5
  loop: start=0, step=1, limit=4
  $region2: #{perceptual_loss.1} parent=0 // loop_pre_header
    _
  $region3: #{perceptual_loss.1} parent=0 // loop_header
    %s10 = sphi 0, %s14
    %p11 = scmp.ge.s32.totalorder %s10, 4
    %s20 = sphi 0, %s22
    %s23 = sphi 0, %s20
    %s24 = sphi 0, %s23
    %s40 = sphi 0, %s24
    %s46 = sphi 0, %s48
    %s49 = sphi 0, %s46
    %s50 = sphi 0, %s49
    %s66 = sphi 0, %s50
    %s70 = sphi 0, %s70
    %s72 = sphi 0, %s70
    %s73 = sphi 0, %s72
    %s87 = sphi 0, %s73
    %s91 = sphi 0, %s91
    %s93 = sphi 0, %s91
    %s94 = sphi 0, %s93
    %s108 = sphi 0, %s94
    %s114 = sphi 0, %s116
    %s117 = sphi 0, %s114
    %s118 = sphi 0, %s117
    %s134 = sphi 0, %s118
  $region4: #{perceptual_loss.1} parent=0 // loop_header_branch
    %13 = sbr.rel (%p11) target = $region8
  $region5: #{perceptual_loss.1} parent=0 // loop_body
    %s15 = ssub.s32 %s10, 1
    %s16 = ssub.s32 %s10, 2
    %s17 = sadd.s32 %s10, 1
    %s18 = ssub.s32 %s10, %s17
    %p19 = scmp.eq.s32.totalorder %s18, 0
    %s21 = sadd.s32 %s20, 1
    %s22 = scalar_select %p19, %s20, %s21
    %p25 = pneg %p19
    %p26 = scmp.eq.s32.totalorder %s10, 1
    %p27 = por %p25, %p26
    %p28 = scmp.ne.s32.totalorder %s20, %s23
    %p29 = scmp.eq.s32.totalorder %s10, 0
    %p30 = por %p28, %p29
    %p31 = scmp.ne.s32.totalorder %s20, %s23
    %p32 = scmp.eq.s32.totalorder %s15, 1
    %p33 = por %p31, %p32
    %p34 = scmp.ne.s32.totalorder %s23, %s24
    %p35 = scmp.eq.s32.totalorder %s15, 0
    %p36 = por %p34, %p35
    %p37 = scmp.ne.s32.totalorder %s23, %s24
    %p38 = scmp.eq.s32.totalorder %s16, 1
    %p39 = por %p37, %p38
    %p41 = scmp.ne.s32.totalorder %s24, %s40
    %p42 = scmp.eq.s32.totalorder %s16, 0
    %p43 = por %p41, %p42
    %s44 = ssub.s32 %s10, %s17
    %p45 = scmp.eq.s32.totalorder %s44, 0
    %s47 = sadd.s32 %s46, 1
    %s48 = scalar_select %p45, %s46, %s47
    %p51 = pneg %p45
    %p52 = scmp.eq.s32.totalorder %s10, 1
    %p53 = por %p51, %p52
    %p54 = scmp.ne.s32.totalorder %s46, %s49
    %p55 = scmp.eq.s32.totalorder %s10, 0
    %p56 = por %p54, %p55
    %p57 = scmp.ne.s32.totalorder %s46, %s49
    %p58 = scmp.eq.s32.totalorder %s15, 1
    %p59 = por %p57, %p58
    %p60 = scmp.ne.s32.totalorder %s49, %s50
    %p61 = scmp.eq.s32.totalorder %s15, 0
    %p62 = por %p60, %p61
    %p63 = scmp.ne.s32.totalorder %s49, %s50
    %p64 = scmp.eq.s32.totalorder %s16, 1
    %p65 = por %p63, %p64
    %p67 = scmp.ne.s32.totalorder %s50, %s66
    %p68 = scmp.eq.s32.totalorder %s16, 0
    %p69 = por %p67, %p68
    %s71 = sadd.s32 %s70, 1
    %p74 = scmp.eq.s32.totalorder %s10, 1
    %p75 = scmp.ne.s32.totalorder %s70, %s72
    %p76 = scmp.eq.s32.totalorder %s10, 0
    %p77 = por %p75, %p76
    %p78 = scmp.ne.s32.totalorder %s70, %s72
    %p79 = scmp.eq.s32.totalorder %s15, 1
    %p80 = por %p78, %p79
    %p81 = scmp.ne.s32.totalorder %s72, %s73
    %p82 = scmp.eq.s32.totalorder %s15, 0
    %p83 = por %p81, %p82
    %p84 = scmp.ne.s32.totalorder %s72, %s73
    %p85 = scmp.eq.s32.totalorder %s16, 1
    %p86 = por %p84, %p85
    %p88 = scmp.ne.s32.totalorder %s73, %s87
    %p89 = scmp.eq.s32.totalorder %s16, 0
    %p90 = por %p88, %p89
    %s92 = sadd.s32 %s91, 1
    %p95 = scmp.eq.s32.totalorder %s10, 1
    %p96 = scmp.ne.s32.totalorder %s91, %s93
    %p97 = scmp.eq.s32.totalorder %s10, 0
    %p98 = por %p96, %p97
    %p99 = scmp.ne.s32.totalorder %s91, %s93
    %p100 = scmp.eq.s32.totalorder %s15, 1
    %p101 = por %p99, %p100
    %p102 = scmp.ne.s32.totalorder %s93, %s94
    %p103 = scmp.eq.s32.totalorder %s15, 0
    %p104 = por %p102, %p103
    %p105 = scmp.ne.s32.totalorder %s93, %s94
    %p106 = scmp.eq.s32.totalorder %s16, 1
    %p107 = por %p105, %p106
    %p109 = scmp.ne.s32.totalorder %s94, %s108
    %p110 = scmp.eq.s32.totalorder %s16, 0
    %p111 = por %p109, %p110
    %s112 = ssub.s32 %s10, %s17
    %p113 = scmp.eq.s32.totalorder %s112, 0
    %s115 = sadd.s32 %s114, 1
    %s116 = scalar_select %p113, %s114, %s115
    %p119 = pneg %p113
    %p120 = scmp.eq.s32.totalorder %s10, 1
    %p121 = por %p119, %p120
    %p122 = scmp.ne.s32.totalorder %s114, %s117
    %p123 = scmp.eq.s32.totalorder %s10, 0
    %p124 = por %p122, %p123
    %p125 = scmp.ne.s32.totalorder %s114, %s117
    %p126 = scmp.eq.s32.totalorder %s15, 1
    %p127 = por %p125, %p126
    %p128 = scmp.ne.s32.totalorder %s117, %s118
    %p129 = scmp.eq.s32.totalorder %s15, 0
    %p130 = por %p128, %p129
    %p131 = scmp.ne.s32.totalorder %s117, %s118
    %p132 = scmp.eq.s32.totalorder %s16, 1
    %p133 = por %p131, %p132
    %p135 = scmp.ne.s32.totalorder %s118, %s134
    %p136 = scmp.eq.s32.totalorder %s16, 0
    %p137 = por %p135, %p136
    %p138 = scmp.le.s32.totalorder 1, %s10
    %p139 = scmp.lt.s32.totalorder %s10, 3
    %p140 = pnand %p138, %p139
    %p141 = pneg %p140
    // Predicated region
    $region9: #{perceptual_loss.1} parent=5 // pred_check
      _
    $region10: #{perceptual_loss.1} parent=5 // pred_check_branch
      %143 = sbr.rel (%p140) target = $region12
    $region11: #{perceptual_loss.1} parent=5 // pred_region
      %s144 = ssub.s32 %s10, 1
      // Predicated region
      $region13: #{perceptual_loss.1} parent=11 // pred_check
        %p145 = pneg %p83
      $region14: #{perceptual_loss.1} parent=11 // pred_check_branch
        %147 = sbr.rel (%p145) target = $region16
      $region15: #{perceptual_loss.1} parent=11 // pred_region
        _
      $region16: #{perceptual_loss.1} parent=11 // pred_fallthru
        _
      // Predicated region
      $region17: #{perceptual_loss.1} parent=11 // pred_check
        %p148 = pneg %p104
      $region18: #{perceptual_loss.1} parent=11 // pred_check_branch
        %150 = sbr.rel (%p148) target = $region20
      $region19: #{perceptual_loss.1} parent=11 // pred_region
        _
      $region20: #{perceptual_loss.1} parent=11 // pred_fallthru
        _
    $region12: #{perceptual_loss.1} parent=5 // pred_fallthru
      _
    %p151 = scmp.lt.s32.totalorder %s10, 2
    // Predicated region
    $region21: #{perceptual_loss.1} parent=5 // pred_check
      %p152 = pneg %p151
    $region22: #{perceptual_loss.1} parent=5 // pred_check_branch
      %154 = sbr.rel (%p152) target = $region24
    $region23: #{perceptual_loss.1} parent=5 // pred_region
      // Predicated region
      $region25: #{perceptual_loss.1} parent=23 // pred_check
        %p155 = pneg %p30
      $region26: #{perceptual_loss.1} parent=23 // pred_check_branch
        %157 = sbr.rel (%p155) target = $region28
      $region27: #{perceptual_loss.1} parent=23 // pred_region
        %p158 = scmp.lt.s32.totalorder %s10, 1
        %s159 = scalar_select %p158, %s10, 1
        %s160 = smul.addr %s159, 2
        %s161 = smul.addr %s160, 4
        %s162 = scalar_lea.vmem %s0, %s161
      $region28: #{perceptual_loss.1} parent=23 // pred_fallthru
        _
      // Predicated region
      $region29: #{perceptual_loss.1} parent=23 // pred_check
        %p163 = pneg %p56
      $region30: #{perceptual_loss.1} parent=23 // pred_check_branch
        %165 = sbr.rel (%p163) target = $region32
      $region31: #{perceptual_loss.1} parent=23 // pred_region
        %p166 = scmp.lt.s32.totalorder %s10, 1
        %s167 = scalar_select %p166, %s10, 1
        %s168 = smul.addr %s167, 2
        %s169 = smul.addr %s168, 4
        %s170 = scalar_lea.vmem %s1, %s169
      $region32: #{perceptual_loss.1} parent=23 // pred_fallthru
        _
    $region24: #{perceptual_loss.1} parent=5 // pred_fallthru
      _
    %p171 = scmp.le.s32.totalorder 1, %s10
    %p172 = scmp.lt.s32.totalorder %s10, 3
    %p173 = pnand %p171, %p172
    %p174 = pneg %p173
    // Predicated region
    $region33: #{perceptual_loss.1} parent=5 // pred_check
      _
    $region34: #{perceptual_loss.1} parent=5 // pred_check_branch
      %176 = sbr.rel (%p173) target = $region36
    $region35: #{perceptual_loss.1} parent=5 // pred_region
      %s177 = ssub.s32 %s10, 1
      %p178 = scmp.lt.s32.totalorder %s15, 1
      %s179 = scalar_select %p178, %s15, 1
      %s180 = smul.addr %s179, 2
      %s181 = smul.addr %s180, 4
      %s182 = scalar_lea.vmem %s0, %s181
      %p183 = pneg %p36
      %p184 = pneg %p33
      %p185 = scmp.lt.s32.totalorder %s15, 1
      %s186 = scalar_select %p185, %s15, 1
      %s187 = smul.addr %s186, 2
      %s188 = smul.addr %s187, 4
      %s189 = scalar_lea.vmem %s1, %s188
      %p190 = pneg %p62
      %p191 = pneg %p59
      %p192 = pneg %p83
      %p193 = pneg %p80
      %p194 = pneg %p104
      %p195 = pneg %p101
      %p196 = pneg %p130
      %p197 = pneg %p127
      %p198 = scmp.lt.s32.totalorder %s15, 1
      %s199 = scalar_select %p198, %s15, 1
      %s200 = smul.addr %s199, 2
      %s201 = smul.addr %s200, 2
      %s202 = scalar_lea.vmem %s4, %s201
      %p203 = scmp.lt.s32.totalorder %s15, 1
      %s204 = scalar_select %p203, %s15, 1
      %s205 = smul.addr %s204, 2
      %s206 = smul.addr %s205, 4
      %s207 = scalar_lea.vmem %s0, %s206
      %p208 = scmp.lt.s32.totalorder %s15, 1
      %s209 = scalar_select %p208, %s15, 1
      %s210 = smul.addr %s209, 2
      %s211 = smul.addr %s210, 4
      %s212 = scalar_lea.vmem %s1, %s211
      %p213 = scmp.lt.s32.totalorder %s15, 1
      %s214 = scalar_select %p213, %s15, 1
      %s215 = smul.addr %s214, 2
      %s216 = smul.addr %s215, 2
      %s217 = scalar_lea.vmem %s4, %s216
      %v218 = vld [vmem:[%s207] sm:$0x77]
      %v219 = vsub.f32 %v218, 0.485
      %v220 = vmul.f32 %v219, 4.366812
      %v221 = vsub.f32 %v218, 0.456
      %v222 = vmul.f32 %v221, 4.464286
      %v223 = vsub.f32 %v218, 0.406
      %v224 = vmul.f32 %v223, 4.4444447
      %v226 = vperm.slane %v220, 0
      %v227 = vperm.slane %v220, 4
      %v231 = vperm.slane %v222, 1
      %v232 = vperm.slane %v222, 5
      %v236 = vperm.slane %v224, 2
      %v237 = vperm.slane %v224, 6
      %vm240 = vcmask 1040384
      %v241 = vsel %vm240, %v226, %v231
      %v242 = vsel %vm240, %v227, %v232
      %vm243 = vcmask 1041408
      %v244 = vsel %vm243, %v241, %v236
      %v245 = vsel %vm243, %v242, %v237
      %246 = vrot.lane.b32.xlu0 %v244, 17
      %v247 = vpop.permute.xlu0 %246
      %248 = vrot.lane.b32.xlu0 %v245, 17
      %v249 = vpop.permute.xlu0 %248
      %v250 = vlaneseq
      %v251 = vand.u32 %v250, 127
      %vm252 = vcmp.lt.s32.totalorder %v251, 17
      %v253 = vsel %vm252, %v247, %v249
      %v254 = vsel %vm252, %v249, %v247
      %v255 = vld [vmem:[%s3] ss:$8 sm:$0x3]
      %v257 = vperm.slane %v255, 0
      %v258 = vperm.slane %v255, 1
      %v261 = vmul.f32 %v254, %v257
      %v262 = vmul.f32 %v253, %v258
      %263 = vrot.lane.b32.xlu0 %v244, 16
      %v264 = vpop.permute.xlu0 %263
      %265 = vrot.lane.b32.xlu0 %v245, 16
      %v266 = vpop.permute.xlu0 %265
      %vm267 = vcmp.lt.s32.totalorder %v251, 16
      %v268 = vsel %vm267, %v264, %v266
      %v269 = vsel %vm267, %v266, %v264
      %s270 = scalar_lea.vmem %s3, 1
      %v271 = vld [vmem:[%s270] ss:$8 sm:$0x3]
      %v273 = vperm.slane %v271, 0
      %v274 = vperm.slane %v271, 1
      %v277 = vmul.f32 %v269, %v273
      %v278 = vmul.f32 %v268, %v274
      %279 = vrot.lane.b32.xlu0 %v244, 15
      %v280 = vpop.permute.xlu0 %279
      %281 = vrot.lane.b32.xlu0 %v245, 15
      %v282 = vpop.permute.xlu0 %281
      %vm283 = vcmp.lt.s32.totalorder %v251, 15
      %v284 = vsel %vm283, %v280, %v282
      %v285 = vsel %vm283, %v282, %v280
      %s286 = scalar_lea.vmem %s3, 2
      %v287 = vld [vmem:[%s286] ss:$8 sm:$0x3]
      %v289 = vperm.slane %v287, 0
      %v290 = vperm.slane %v287, 1
      %v293 = vmul.f32 %v285, %v289
      %v294 = vmul.f32 %v284, %v290
      %295 = vrot.lane.b32.xlu0 %v244, 1
      %v296 = vpop.permute.xlu0 %295
      %297 = vrot.lane.b32.xlu0 %v245, 1
      %v298 = vpop.permute.xlu0 %297
      %vm299 = vcmp.lt.s32.totalorder %v251, 1
      %v300 = vsel %vm299, %v296, %v298
      %v301 = vsel %vm299, %v298, %v296
      %s302 = scalar_lea.vmem %s3, 3
      %v303 = vld [vmem:[%s302] ss:$8 sm:$0x3]
      %v305 = vperm.slane %v303, 0
      %v306 = vperm.slane %v303, 1
      %v309 = vmul.f32 %v301, %v305
      %v310 = vmul.f32 %v300, %v306
      %311 = vrot.lane.b32.xlu0 %v244, 127
      %v312 = vpop.permute.xlu0 %311
      %313 = vrot.lane.b32.xlu0 %v245, 127
      %v314 = vpop.permute.xlu0 %313
      %vm315 = vcmp.lt.s32.totalorder %v251, 127
      %v316 = vsel %vm315, %v312, %v314
      %v317 = vsel %vm315, %v314, %v312
      %s318 = scalar_lea.vmem %s3, 5
      %v319 = vld [vmem:[%s318] ss:$8 sm:$0x3]
      %v321 = vperm.slane %v319, 0
      %v322 = vperm.slane %v319, 1
      %v325 = vmul.f32 %v316, %v321
      %v326 = vmul.f32 %v317, %v322
      %327 = vrot.lane.b32.xlu0 %v244, 113
      %v328 = vpop.permute.xlu0 %327
      %329 = vrot.lane.b32.xlu0 %v245, 113
      %v330 = vpop.permute.xlu0 %329
      %vm331 = vcmp.lt.s32.totalorder %v251, 113
      %v332 = vsel %vm331, %v328, %v330
      %v333 = vsel %vm331, %v330, %v328
      %s334 = scalar_lea.vmem %s3, 6
      %v335 = vld [vmem:[%s334] ss:$8 sm:$0x3]
      %v337 = vperm.slane %v335, 0
      %v338 = vperm.slane %v335, 1
      %v341 = vmul.f32 %v332, %v337
      %v342 = vmul.f32 %v333, %v338
      %343 = vrot.lane.b32.xlu0 %v244, 112
      %v344 = vpop.permute.xlu0 %343
      %345 = vrot.lane.b32.xlu0 %v245, 112
      %v346 = vpop.permute.xlu0 %345
      %vm347 = vcmp.lt.s32.totalorder %v251, 112
      %v348 = vsel %vm347, %v344, %v346
      %v349 = vsel %vm347, %v346, %v344
      %s350 = scalar_lea.vmem %s3, 7
      %v351 = vld [vmem:[%s350] ss:$8 sm:$0x3]
      %v353 = vperm.slane %v351, 0
      %v354 = vperm.slane %v351, 1
      %v357 = vmul.f32 %v348, %v353
      %v358 = vmul.f32 %v349, %v354
      %359 = vrot.lane.b32.xlu0 %v244, 111
      %v360 = vpop.permute.xlu0 %359
      %361 = vrot.lane.b32.xlu0 %v245, 111
      %v362 = vpop.permute.xlu0 %361
      %vm363 = vcmp.lt.s32.totalorder %v251, 111
      %v364 = vsel %vm363, %v360, %v362
      %v365 = vsel %vm363, %v362, %v360
      %s366 = scalar_lea.vmem %s3, 16
      %v367 = vld [vmem:[%s366] ss:$8 sm:$0x3]
      %v369 = vperm.slane %v367, 0
      %v370 = vperm.slane %v367, 1
      %v373 = vmul.f32 %v364, %v369
      %v374 = vmul.f32 %v365, %v370
      %v377 = vrot.slane %v277, 5
      %v378 = vrot.slane %v278, 5
      %v383 = vrot.slane %v293, 2
      %v384 = vrot.slane %v294, 2
      %v389 = vrot.slane %v309, 7
      %v390 = vrot.slane %v310, 7
      %v395 = vrot.slane %v244, 4
      %v396 = vrot.slane %v245, 4
      %v401 = vrot.slane %v325, 1
      %v402 = vrot.slane %v326, 1
      %v407 = vrot.slane %v341, 6
      %v408 = vrot.slane %v342, 6
      %v413 = vrot.slane %v357, 3
      %v414 = vrot.slane %v358, 3
      %vm417 = vcmask 1042432
      %v418 = vsel %vm417, %v261, %v377
      %v419 = vsel %vm417, %v262, %v378
      %vm420 = vcmask 1045504
      %v421 = vsel %vm420, %v418, %v383
      %v422 = vsel %vm420, %v419, %v384
      %v423 = vsel %vm240, %v383, %v389
      %v424 = vsel %vm240, %v384, %v390
      %vm425 = vcmask 1043456
      %v426 = vsel %vm425, %v423, %v395
      %v427 = vsel %vm425, %v424, %v396
      %vm428 = vcmask 1046528
      %v429 = vsel %vm428, %v426, %v401
      %v430 = vsel %vm428, %v427, %v402
      %v431 = vsel %vm243, %v401, %v407
      %v432 = vsel %vm243, %v402, %v408
      %vm433 = vcmask 1044480
      %v434 = vsel %vm433, %v431, %v413
      %v435 = vsel %vm433, %v432, %v414
      %v436 = vsel %vm417, %v373, 1.0
      %v437 = vsel %vm417, %v374, 1.0
      %v438 = vld [vmem:[%s2] sm:$0xff]
      %v439 = vld [vmem:[%s2 + $0x8] sm:$0xff]
      %v440 = vld [vmem:[%s2 + $0x10] sm:$0xff]
      %v441 = vld [vmem:[%s2 + $0x18] sm:$0xff]
      %v442 = vld [vmem:[%s2 + $0x20] sm:$0xff]
      %v443 = vld [vmem:[%s2 + $0x28] sm:$0xff]
      %v444 = vld [vmem:[%s2 + $0x30] sm:$0xff]
      %v445 = vld [vmem:[%s2 + $0x38] sm:$0xff]
      %vm446 = vcmask 228352
      %v448 = vsel %vm446, %v438, 0
      %v451 = vsel %vm446, %v439, 0
      %v454 = vsel %vm446, %v440, 0
      %v457 = vsel %vm446, %v441, 0
      %v460 = vsel %vm446, %v442, 0
      %v463 = vsel %vm446, %v443, 0
      %v466 = vsel %vm446, %v444, 0
      %v469 = vsel %vm446, %v445, 0
      %v472 = vsel %vm425, %v436, 0
      %v475 = vsel %vm425, %v437, 0
      %477 = vmatpush.msra.mxu0 0.0
      %478 = vmatpush.msra.mxu0 0.0
      %479 = vmatpush.msra.mxu0 0.0
      %480 = vmatpush.msra.mxu0 0.0
      %481 = vmatpush.msra.mxu0 0.0
      %482 = vmatpush.msra.mxu0 0.0
      %483 = vmatpush.msra.mxu0 0.0
      %484 = vmatpush.msra.mxu0 0.0
      %485 = vmatpush.msra.mxu0 0.0
      %486 = vmatpush.msra.mxu0 0.0
      %487 = vmatpush.msra.mxu0 0.0
      %488 = vmatpush.msra.mxu0 0.0
      %489 = vmatpush.msra.mxu0 %v472
      %490 = vmatpush.msra.mxu0 %v434
      %491 = vmatpush.msra.mxu0 %v429
      %492 = vmatpush.msra.mxu0 %v421
      %493 = vmatmul.f32.gmra.mxu0 %v448
      %v494 = vpop.f32.mrf.mxu0
      %v495 = vadd.f32 0.0, %v494
      %496 = vmatmul.f32.gmra.mxu0 %v451
      %v497 = vpop.f32.mrf.mxu0
      %v498 = vadd.f32 0.0, %v497
      %499 = vmatmul.f32.gmra.mxu0 %v454
      %v500 = vpop.f32.mrf.mxu0
      %v501 = vadd.f32 0.0, %v500
      %502 = vmatmul.f32.gmra.mxu0 %v457
      %v503 = vpop.f32.mrf.mxu0
      %v504 = vadd.f32 0.0, %v503
      %505 = vmatmul.f32.gmra.mxu0 %v460
      %v506 = vpop.f32.mrf.mxu0
      %v507 = vadd.f32 0.0, %v506
      %508 = vmatmul.f32.gmra.mxu0 %v463
      %v509 = vpop.f32.mrf.mxu0
      %v510 = vadd.f32 0.0, %v509
      %511 = vmatmul.f32.gmra.mxu0 %v466
      %v512 = vpop.f32.mrf.mxu0
      %v513 = vadd.f32 0.0, %v512
      %514 = vmatmul.f32.gmra.mxu0 %v469
      %v515 = vpop.f32.mrf.mxu0
      %v516 = vadd.f32 0.0, %v515
      %517 = vdwg.mxu0
      %518 = vmatpush.msra.mxu0 0.0
      %519 = vmatpush.msra.mxu0 0.0
      %520 = vmatpush.msra.mxu0 0.0
      %521 = vmatpush.msra.mxu0 0.0
      %522 = vmatpush.msra.mxu0 0.0
      %523 = vmatpush.msra.mxu0 0.0
      %524 = vmatpush.msra.mxu0 0.0
      %525 = vmatpush.msra.mxu0 0.0
      %526 = vmatpush.msra.mxu0 0.0
      %527 = vmatpush.msra.mxu0 0.0
      %528 = vmatpush.msra.mxu0 0.0
      %529 = vmatpush.msra.mxu0 0.0
      %530 = vmatpush.msra.mxu0 %v475
      %531 = vmatpush.msra.mxu0 %v435
      %532 = vmatpush.msra.mxu0 %v430
      %533 = vmatpush.msra.mxu0 %v422
      %534 = vmatmul.f32.gmra.mxu0 %v448
      %v535 = vpop.f32.mrf.mxu0
      %v536 = vadd.f32 0.0, %v535
      %537 = vmatmul.f32.gmra.mxu0 %v451
      %v538 = vpop.f32.mrf.mxu0
      %v539 = vadd.f32 0.0, %v538
      %540 = vmatmul.f32.gmra.mxu0 %v454
      %v541 = vpop.f32.mrf.mxu0
      %v542 = vadd.f32 0.0, %v541
      %543 = vmatmul.f32.gmra.mxu0 %v457
      %v544 = vpop.f32.mrf.mxu0
      %v545 = vadd.f32 0.0, %v544
      %546 = vmatmul.f32.gmra.mxu0 %v460
      %v547 = vpop.f32.mrf.mxu0
      %v548 = vadd.f32 0.0, %v547
      %549 = vmatmul.f32.gmra.mxu0 %v463
      %v550 = vpop.f32.mrf.mxu0
      %v551 = vadd.f32 0.0, %v550
      %552 = vmatmul.f32.gmra.mxu0 %v466
      %v553 = vpop.f32.mrf.mxu0
      %v554 = vadd.f32 0.0, %v553
      %555 = vmatmul.f32.gmra.mxu0 %v469
      %v556 = vpop.f32.mrf.mxu0
      %v557 = vadd.f32 0.0, %v556
      %558 = vdwg.mxu0
      %v559 = vld [vmem:[%s212] sm:$0x77]
      %v560 = vsub.f32 %v559, 0.485
      %v561 = vmul.f32 %v560, 4.366812
      %v562 = vsub.f32 %v559, 0.456
      %v563 = vmul.f32 %v562, 4.464286
      %v564 = vsub.f32 %v559, 0.406
      %v565 = vmul.f32 %v564, 4.4444447
      %v567 = vperm.slane %v561, 0
      %v568 = vperm.slane %v561, 4
      %v572 = vperm.slane %v563, 1
      %v573 = vperm.slane %v563, 5
      %v577 = vperm.slane %v565, 2
      %v578 = vperm.slane %v565, 6
      %v581 = vsel %vm240, %v567, %v572
      %v582 = vsel %vm240, %v568, %v573
      %v583 = vsel %vm243, %v581, %v577
      %v584 = vsel %vm243, %v582, %v578
      %585 = vrot.lane.b32.xlu0 %v583, 17
      %v586 = vpop.permute.xlu0 %585
      %587 = vrot.lane.b32.xlu0 %v584, 17
      %v588 = vpop.permute.xlu0 %587
      %v589 = vsel %vm252, %v586, %v588
      %v590 = vsel %vm252, %v588, %v586
      %v591 = vmul.f32 %v590, %v257
      %v592 = vmul.f32 %v589, %v258
      %593 = vrot.lane.b32.xlu0 %v583, 16
      %v594 = vpop.permute.xlu0 %593
      %595 = vrot.lane.b32.xlu0 %v584, 16
      %v596 = vpop.permute.xlu0 %595
      %v597 = vsel %vm267, %v594, %v596
      %v598 = vsel %vm267, %v596, %v594
      %v599 = vmul.f32 %v598, %v273
      %v600 = vmul.f32 %v597, %v274
      %601 = vrot.lane.b32.xlu0 %v583, 15
      %v602 = vpop.permute.xlu0 %601
      %603 = vrot.lane.b32.xlu0 %v584, 15
      %v604 = vpop.permute.xlu0 %603
      %v605 = vsel %vm283, %v602, %v604
      %v606 = vsel %vm283, %v604, %v602
      %v607 = vmul.f32 %v606, %v289
      %v608 = vmul.f32 %v605, %v290
      %609 = vrot.lane.b32.xlu0 %v583, 1
      %v610 = vpop.permute.xlu0 %609
      %611 = vrot.lane.b32.xlu0 %v584, 1
      %v612 = vpop.permute.xlu0 %611
      %v613 = vsel %vm299, %v610, %v612
      %v614 = vsel %vm299, %v612, %v610
      %v615 = vmul.f32 %v614, %v305
      %v616 = vmul.f32 %v613, %v306
      %617 = vrot.lane.b32.xlu0 %v583, 127
      %v618 = vpop.permute.xlu0 %617
      %619 = vrot.lane.b32.xlu0 %v584, 127
      %v620 = vpop.permute.xlu0 %619
      %v621 = vsel %vm315, %v618, %v620
      %v622 = vsel %vm315, %v620, %v618
      %v623 = vmul.f32 %v621, %v321
      %v624 = vmul.f32 %v622, %v322
      %625 = vrot.lane.b32.xlu0 %v583, 113
      %v626 = vpop.permute.xlu0 %625
      %627 = vrot.lane.b32.xlu0 %v584, 113
      %v628 = vpop.permute.xlu0 %627
      %v629 = vsel %vm331, %v626, %v628
      %v630 = vsel %vm331, %v628, %v626
      %v631 = vmul.f32 %v629, %v337
      %v632 = vmul.f32 %v630, %v338
      %633 = vrot.lane.b32.xlu0 %v583, 112
      %v634 = vpop.permute.xlu0 %633
      %635 = vrot.lane.b32.xlu0 %v584, 112
      %v636 = vpop.permute.xlu0 %635
      %v637 = vsel %vm347, %v634, %v636
      %v638 = vsel %vm347, %v636, %v634
      %v639 = vmul.f32 %v637, %v353
      %v640 = vmul.f32 %v638, %v354
      %641 = vrot.lane.b32.xlu0 %v583, 111
      %v642 = vpop.permute.xlu0 %641
      %643 = vrot.lane.b32.xlu0 %v584, 111
      %v644 = vpop.permute.xlu0 %643
      %v645 = vsel %vm363, %v642, %v644
      %v646 = vsel %vm363, %v644, %v642
      %v647 = vmul.f32 %v645, %v369
      %v648 = vmul.f32 %v646, %v370
      %v651 = vrot.slane %v599, 5
      %v652 = vrot.slane %v600, 5
      %v657 = vrot.slane %v607, 2
      %v658 = vrot.slane %v608, 2
      %v663 = vrot.slane %v615, 7
      %v664 = vrot.slane %v616, 7
      %v669 = vrot.slane %v583, 4
      %v670 = vrot.slane %v584, 4
      %v675 = vrot.slane %v623, 1
      %v676 = vrot.slane %v624, 1
      %v681 = vrot.slane %v631, 6
      %v682 = vrot.slane %v632, 6
      %v687 = vrot.slane %v639, 3
      %v688 = vrot.slane %v640, 3
      %v691 = vsel %vm417, %v591, %v651
      %v692 = vsel %vm417, %v592, %v652
      %v693 = vsel %vm420, %v691, %v657
      %v694 = vsel %vm420, %v692, %v658
      %v695 = vsel %vm240, %v657, %v663
      %v696 = vsel %vm240, %v658, %v664
      %v697 = vsel %vm425, %v695, %v669
      %v698 = vsel %vm425, %v696, %v670
      %v699 = vsel %vm428, %v697, %v675
      %v700 = vsel %vm428, %v698, %v676
      %v701 = vsel %vm243, %v675, %v681
      %v702 = vsel %vm243, %v676, %v682
      %v703 = vsel %vm433, %v701, %v687
      %v704 = vsel %vm433, %v702, %v688
      %v705 = vsel %vm417, %v647, 1.0
      %v706 = vsel %vm417, %v648, 1.0
      %v708 = vsel %vm425, %v705, 0
      %v711 = vsel %vm425, %v706, 0
      %713 = vmatpush.msra.mxu0 0.0
      %714 = vmatpush.msra.mxu0 0.0
      %715 = vmatpush.msra.mxu0 0.0
      %716 = vmatpush.msra.mxu0 0.0
      %717 = vmatpush.msra.mxu0 0.0
      %718 = vmatpush.msra.mxu0 0.0
      %719 = vmatpush.msra.mxu0 0.0
      %720 = vmatpush.msra.mxu0 0.0
      %721 = vmatpush.msra.mxu0 0.0
      %722 = vmatpush.msra.mxu0 0.0
      %723 = vmatpush.msra.mxu0 0.0
      %724 = vmatpush.msra.mxu0 0.0
      %725 = vmatpush.msra.mxu0 %v708
      %726 = vmatpush.msra.mxu0 %v703
      %727 = vmatpush.msra.mxu0 %v699
      %728 = vmatpush.msra.mxu0 %v693
      %729 = vmatmul.f32.gmra.mxu0 %v448
      %v730 = vpop.f32.mrf.mxu0
      %v731 = vadd.f32 0.0, %v730
      %732 = vmatmul.f32.gmra.mxu0 %v451
      %v733 = vpop.f32.mrf.mxu0
      %v734 = vadd.f32 0.0, %v733
      %735 = vmatmul.f32.gmra.mxu0 %v454
      %v736 = vpop.f32.mrf.mxu0
      %v737 = vadd.f32 0.0, %v736
      %738 = vmatmul.f32.gmra.mxu0 %v457
      %v739 = vpop.f32.mrf.mxu0
      %v740 = vadd.f32 0.0, %v739
      %741 = vmatmul.f32.gmra.mxu0 %v460
      %v742 = vpop.f32.mrf.mxu0
      %v743 = vadd.f32 0.0, %v742
      %744 = vmatmul.f32.gmra.mxu0 %v463
      %v745 = vpop.f32.mrf.mxu0
      %v746 = vadd.f32 0.0, %v745
      %747 = vmatmul.f32.gmra.mxu0 %v466
      %v748 = vpop.f32.mrf.mxu0
      %v749 = vadd.f32 0.0, %v748
      %750 = vmatmul.f32.gmra.mxu0 %v469
      %v751 = vpop.f32.mrf.mxu0
      %v752 = vadd.f32 0.0, %v751
      %753 = vdwg.mxu0
      %754 = vmatpush.msra.mxu0 0.0
      %755 = vmatpush.msra.mxu0 0.0
      %756 = vmatpush.msra.mxu0 0.0
      %757 = vmatpush.msra.mxu0 0.0
      %758 = vmatpush.msra.mxu0 0.0
      %759 = vmatpush.msra.mxu0 0.0
      %760 = vmatpush.msra.mxu0 0.0
      %761 = vmatpush.msra.mxu0 0.0
      %762 = vmatpush.msra.mxu0 0.0
      %763 = vmatpush.msra.mxu0 0.0
      %764 = vmatpush.msra.mxu0 0.0
      %765 = vmatpush.msra.mxu0 0.0
      %766 = vmatpush.msra.mxu0 %v711
      %767 = vmatpush.msra.mxu0 %v704
      %768 = vmatpush.msra.mxu0 %v700
      %769 = vmatpush.msra.mxu0 %v694
      %770 = vmatmul.f32.gmra.mxu0 %v448
      %v771 = vpop.f32.mrf.mxu0
      %v772 = vadd.f32 0.0, %v771
      %773 = vmatmul.f32.gmra.mxu0 %v451
      %v774 = vpop.f32.mrf.mxu0
      %v775 = vadd.f32 0.0, %v774
      %776 = vmatmul.f32.gmra.mxu0 %v454
      %v777 = vpop.f32.mrf.mxu0
      %v778 = vadd.f32 0.0, %v777
      %779 = vmatmul.f32.gmra.mxu0 %v457
      %v780 = vpop.f32.mrf.mxu0
      %v781 = vadd.f32 0.0, %v780
      %782 = vmatmul.f32.gmra.mxu0 %v460
      %v783 = vpop.f32.mrf.mxu0
      %v784 = vadd.f32 0.0, %v783
      %785 = vmatmul.f32.gmra.mxu0 %v463
      %v786 = vpop.f32.mrf.mxu0
      %v787 = vadd.f32 0.0, %v786
      %788 = vmatmul.f32.gmra.mxu0 %v466
      %v789 = vpop.f32.mrf.mxu0
      %v790 = vadd.f32 0.0, %v789
      %791 = vmatmul.f32.gmra.mxu0 %v469
      %v792 = vpop.f32.mrf.mxu0
      %v793 = vadd.f32 0.0, %v792
      %794 = vdwg.mxu0
      %v795 = vsub.f32 %v495, %v731
      %v796 = vsub.f32 %v536, %v772
      %v797 = vsub.f32 %v498, %v734
      %v798 = vsub.f32 %v539, %v775
      %v799 = vsub.f32 %v501, %v737
      %v800 = vsub.f32 %v542, %v778
      %v801 = vsub.f32 %v504, %v740
      %v802 = vsub.f32 %v545, %v781
      %v803 = vsub.f32 %v507, %v743
      %v804 = vsub.f32 %v548, %v784
      %v805 = vsub.f32 %v510, %v746
      %v806 = vsub.f32 %v551, %v787
      %v807 = vsub.f32 %v513, %v749
      %v808 = vsub.f32 %v554, %v790
      %v809 = vsub.f32 %v516, %v752
      %v810 = vsub.f32 %v557, %v793
      %v811 = vand.u32 2147483647, %v795
      %v812 = vand.u32 2147483647, %v796
      %v813 = vand.u32 2147483647, %v797
      %v814 = vand.u32 2147483647, %v798
      %v815 = vand.u32 2147483647, %v799
      %v816 = vand.u32 2147483647, %v800
      %v817 = vand.u32 2147483647, %v801
      %v818 = vand.u32 2147483647, %v802
      %v819 = vand.u32 2147483647, %v803
      %v820 = vand.u32 2147483647, %v804
      %v821 = vand.u32 2147483647, %v805
      %v822 = vand.u32 2147483647, %v806
      %v823 = vand.u32 2147483647, %v807
      %v824 = vand.u32 2147483647, %v808
      %v825 = vand.u32 2147483647, %v809
      %v826 = vand.u32 2147483647, %v810
      %v827 = vmax.f32 %v495, 0.0
      %v828 = vmax.f32 %v536, 0.0
      %v829 = vmax.f32 %v498, 0.0
      %v830 = vmax.f32 %v539, 0.0
      %v831 = vmax.f32 %v501, 0.0
      %v832 = vmax.f32 %v542, 0.0
      %v833 = vmax.f32 %v504, 0.0
      %v834 = vmax.f32 %v545, 0.0
      %v835 = vmax.f32 %v507, 0.0
      %v836 = vmax.f32 %v548, 0.0
      %v837 = vmax.f32 %v510, 0.0
      %v838 = vmax.f32 %v551, 0.0
      %v839 = vmax.f32 %v513, 0.0
      %v840 = vmax.f32 %v554, 0.0
      %v841 = vmax.f32 %v516, 0.0
      %v842 = vmax.f32 %v557, 0.0
      %v843 = vmax.f32 %v731, 0.0
      %v844 = vmax.f32 %v772, 0.0
      %v845 = vmax.f32 %v734, 0.0
      %v846 = vmax.f32 %v775, 0.0
      %v847 = vmax.f32 %v737, 0.0
      %v848 = vmax.f32 %v778, 0.0
      %v849 = vmax.f32 %v740, 0.0
      %v850 = vmax.f32 %v781, 0.0
      %v851 = vmax.f32 %v743, 0.0
      %v852 = vmax.f32 %v784, 0.0
      %v853 = vmax.f32 %v746, 0.0
      %v854 = vmax.f32 %v787, 0.0
      %v855 = vmax.f32 %v749, 0.0
      %v856 = vmax.f32 %v790, 0.0
      %v857 = vmax.f32 %v752, 0.0
      %v858 = vmax.f32 %v793, 0.0
      %v859 = vsub.f32 %v827, %v843
      %v860 = vsub.f32 %v828, %v844
      %v861 = vsub.f32 %v829, %v845
      %v862 = vsub.f32 %v830, %v846
      %v863 = vsub.f32 %v831, %v847
      %v864 = vsub.f32 %v832, %v848
      %v865 = vsub.f32 %v833, %v849
      %v866 = vsub.f32 %v834, %v850
      %v867 = vsub.f32 %v835, %v851
      %v868 = vsub.f32 %v836, %v852
      %v869 = vsub.f32 %v837, %v853
      %v870 = vsub.f32 %v838, %v854
      %v871 = vsub.f32 %v839, %v855
      %v872 = vsub.f32 %v840, %v856
      %v873 = vsub.f32 %v841, %v857
      %v874 = vsub.f32 %v842, %v858
      %v875 = vand.u32 2147483647, %v859
      %v876 = vand.u32 2147483647, %v860
      %v877 = vand.u32 2147483647, %v861
      %v878 = vand.u32 2147483647, %v862
      %v879 = vand.u32 2147483647, %v863
      %v880 = vand.u32 2147483647, %v864
      %v881 = vand.u32 2147483647, %v865
      %v882 = vand.u32 2147483647, %v866
      %v883 = vand.u32 2147483647, %v867
      %v884 = vand.u32 2147483647, %v868
      %v885 = vand.u32 2147483647, %v869
      %v886 = vand.u32 2147483647, %v870
      %v887 = vand.u32 2147483647, %v871
      %v888 = vand.u32 2147483647, %v872
      %v889 = vand.u32 2147483647, %v873
      %v890 = vand.u32 2147483647, %v874
      %v891 = vadd.f32 %v811, %v813
      %v892 = vadd.f32 %v891, %v815
      %v893 = vadd.f32 %v892, %v817
      %v894 = vadd.f32 %v893, %v819
      %v895 = vadd.f32 %v894, %v821
      %v896 = vadd.f32 %v895, %v823
      %v897 = vadd.f32 %v896, %v825
      %v898 = vrot.slane %v897, 4
      %v899 = vadd.f32 %v897, %v898
      %v900 = vrot.slane %v899, 2
      %v901 = vadd.f32 %v899, %v900
      %v902 = vrot.slane %v901, 1
      %v903 = vadd.f32 %v901, %v902
      %v904 = vadd.f32 %v812, %v814
      %v905 = vadd.f32 %v904, %v816
      %v906 = vadd.f32 %v905, %v818
      %v907 = vadd.f32 %v906, %v820
      %v908 = vadd.f32 %v907, %v822
      %v909 = vadd.f32 %v908, %v824
      %v910 = vadd.f32 %v909, %v826
      %v911 = vrot.slane %v910, 4
      %v912 = vadd.f32 %v910, %v911
      %v913 = vrot.slane %v912, 2
      %v914 = vadd.f32 %v912, %v913
      %v915 = vrot.slane %v914, 1
      %v916 = vadd.f32 %v914, %v915
      %v917 = vadd.f32 %v875, %v877
      %v918 = vadd.f32 %v917, %v879
      %v919 = vadd.f32 %v918, %v881
      %v920 = vadd.f32 %v919, %v883
      %v921 = vadd.f32 %v920, %v885
      %v922 = vadd.f32 %v921, %v887
      %v923 = vadd.f32 %v922, %v889
      %v924 = vrot.slane %v923, 4
      %v925 = vadd.f32 %v923, %v924
      %v926 = vrot.slane %v925, 2
      %v927 = vadd.f32 %v925, %v926
      %v928 = vrot.slane %v927, 1
      %v929 = vadd.f32 %v927, %v928
      %v930 = vadd.f32 %v876, %v878
      %v931 = vadd.f32 %v930, %v880
      %v932 = vadd.f32 %v931, %v882
      %v933 = vadd.f32 %v932, %v884
      %v934 = vadd.f32 %v933, %v886
      %v935 = vadd.f32 %v934, %v888
      %v936 = vadd.f32 %v935, %v890
      %v937 = vrot.slane %v936, 4
      %v938 = vadd.f32 %v936, %v937
      %v939 = vrot.slane %v938, 2
      %v940 = vadd.f32 %v938, %v939
      %v941 = vrot.slane %v940, 1
      %v942 = vadd.f32 %v940, %v941
      %v943 = vsel %vm240, %v903, %v929
      %v944 = vsel %vm240, %v916, %v942
      %v947 = vrot.slane %v944, 6
      %v948 = vsel %vm243, %v943, %v947
      %950 = vst [vmem:[%s217] sm:$0xf] %v948
      %p951 = scmp.lt.s32.totalorder %s15, 1
      %s952 = scalar_select %p951, %s15, 1
      %s953 = smul.addr %s952, 2
      %s954 = smul.addr %s953, 2
      %s955 = scalar_lea.vmem %s4, %s954
      // Predicated region
      $region37: #{perceptual_loss.1} parent=35 // pred_check
        %p956 = pneg %p127
      $region38: #{perceptual_loss.1} parent=35 // pred_check_branch
        %958 = sbr.rel (%p956) target = $region40
      $region39: #{perceptual_loss.1} parent=35 // pred_region
        _
      $region40: #{perceptual_loss.1} parent=35 // pred_fallthru
        _
    $region36: #{perceptual_loss.1} parent=5 // pred_fallthru
      _
    %p959 = scmp.le.s32.totalorder 2, %s10
    // Predicated region
    $region41: #{perceptual_loss.1} parent=5 // pred_check
      %p960 = pneg %p959
    $region42: #{perceptual_loss.1} parent=5 // pred_check_branch
      %962 = sbr.rel (%p960) target = $region44
    $region43: #{perceptual_loss.1} parent=5 // pred_region
      %s963 = ssub.s32 %s10, 2
      // Predicated region
      $region45: #{perceptual_loss.1} parent=43 // pred_check
        %p964 = pneg %p133
      $region46: #{perceptual_loss.1} parent=43 // pred_check_branch
        %966 = sbr.rel (%p964) target = $region48
      $region47: #{perceptual_loss.1} parent=43 // pred_region
        %p967 = scmp.lt.s32.totalorder %s16, 1
        %s968 = scalar_select %p967, %s16, 1
        %s969 = smul.addr %s968, 2
        %s970 = smul.addr %s969, 2
        %s971 = scalar_lea.vmem %s4, %s970
      $region48: #{perceptual_loss.1} parent=43 // pred_fallthru
        _
    $region44: #{perceptual_loss.1} parent=5 // pred_fallthru
      _
  $region6: #{perceptual_loss.1} parent=0 // loop_footer
    %s14 = sadd.s32 1, %s10
  $region7: #{perceptual_loss.1} parent=0 // loop_footer_branch
    %9 = sbr.rel target = $region3
  $region8: #{perceptual_loss.1} parent=0 // loop_exit
    _

</llo_original>
